<compile_context>
chip_gen: v7x
topology: tpu7x:2x2x1
jax: 0.10.0
libtpu: 0.0.40
codegen_flags: <defaults>
</compile_context>

<pallas_src>
import functools

import jax
import jax.numpy as jnp
from jax import lax
from jax.experimental import pallas as pl
from jax.experimental.pallas import tpu as pltpu


HID_DIM = 128
LEAKY_SLOPE = 0.1


def _leaky_relu(x, slope=LEAKY_SLOPE):
    # slope < 1  =>  max(x, slope*x) == leaky_relu(x); single vmul+vmax (VPU).
    return jnp.maximum(x, slope * x)


def _round_up(n, m):
    return ((n + m - 1) // m) * m


def learner_fwd_kernel(x_ref, w1_ref, b1_ref, w2_ref, b2_ref, w3_ref, b3_ref,
                       o_ref):
    x = x_ref[...]

    # block_1: Linear + LeakyReLU(0.1)
    h1 = jnp.dot(x, w1_ref[...], preferred_element_type=jnp.float32) + b1_ref[...]
    h1 = _leaky_relu(h1)
    # TODO(synk): training-mode / mc_dropout stochastic dropout not implemented
    #             (would use pltpu.prng_seed + pltpu.stateful_bernoulli);
    #             eval mode == identity.

    # block_2: Linear + LeakyReLU(0.1)
    h2 = jnp.dot(h1, w2_ref[...], preferred_element_type=jnp.float32) + b2_ref[...]
    h2 = _leaky_relu(h2)

    # fclayer: Linear(hid -> 1) as an NT matmul producing a lane-dense row:
    #   (1, hid) x (bt, hid)^T -> (1, bt)   (batch in the lane dimension)
    out_row = lax.dot_general(
        w3_ref[...], h2,
        dimension_numbers=(((1,), (1,)), ((), ())),
        preferred_element_type=jnp.float32)
    o_ref[...] = (out_row + b3_ref[0, 0]).astype(o_ref.dtype)


@functools.partial(jax.jit, static_argnames=("batch_tile",))
def learner_forward(x, w1, b1, w2, b2, w3_row, b3, *, batch_tile=512):
    B, D_in = x.shape
    hid = w1.shape[1]

    # Effective batch tile: multiple of 128 lanes, no larger than the padded
    # batch (so small batches don't over-pad); pad B up to a tile multiple.
    bt = _round_up(min(batch_tile, _round_up(B, 128)), 128)
    B_pad = _round_up(B, bt)
    if B_pad != B:
        x = jnp.pad(x, ((0, B_pad - B), (0, 0)))
    num_tiles = B_pad // bt

    in_specs = [
        pl.BlockSpec((bt, D_in),  lambda i: (i, 0)),   # x   (tiled over batch)
        pl.BlockSpec((D_in, hid), lambda i: (0, 0)),   # w1  (resident)
        pl.BlockSpec((1, hid),    lambda i: (0, 0)),   # b1
        pl.BlockSpec((hid, hid),  lambda i: (0, 0)),   # w2
        pl.BlockSpec((1, hid),    lambda i: (0, 0)),   # b2
        pl.BlockSpec((1, hid),    lambda i: (0, 0)),   # w3 stored as (1, hid)
        pl.BlockSpec(memory_space=pltpu.MemorySpace.SMEM),  # b3 scalar (1, 1)
    ]
    # Lane-dense output: one row per kernel, batch along the lane dimension.
    out_specs = pl.BlockSpec((1, bt), lambda i: (0, i))

    out_row = pl.pallas_call(
        learner_fwd_kernel,
        out_shape=jax.ShapeDtypeStruct((1, B_pad), x.dtype),
        grid_spec=pltpu.PrefetchScalarGridSpec(
            num_scalar_prefetch=0,
            grid=(num_tiles,),
            in_specs=in_specs,
            out_specs=out_specs,
        ),
        compiler_params=pltpu.CompilerParams(
            dimension_semantics=("parallel",),
            vmem_limit_bytes=32 * 1024 * 1024,
        ),
    )(x, w1, b1, w2, b2, w3_row, b3)

    # (1, B_pad) -> (B, 1): drop padding, put batch back in the row dimension.
    return out_row[0, :B][:, None]


def init_params(key, input_dim, hid_dim=HID_DIM, dtype=jnp.float32):
    """Deterministic PyTorch-style (uniform +/- 1/sqrt(fan_in)) init."""
    ks = jax.random.split(key, 6)

    def lin(kw, kb, fan_in, fan_out):
        bound = 1.0 / (fan_in ** 0.5)
        w = jax.random.uniform(kw, (fan_in, fan_out), dtype, -bound, bound)
        b = jax.random.uniform(kb, (1, fan_out), dtype, -bound, bound)
        return w, b

    w1, b1 = lin(ks[0], ks[1], input_dim, hid_dim)
    w2, b2 = lin(ks[2], ks[3], hid_dim, hid_dim)
    w3, b3 = lin(ks[4], ks[5], hid_dim, 1)
    w3_row = w3.T  # store final weight lane-dense as (1, hid)
    return w1, b1, w2, b2, w3_row, b3


def reference_forward(x, w1, b1, w2, b2, w3_row, b3):
    h = x @ w1 + b1
    h1 = jnp.where(h > 0, h, LEAKY_SLOPE * h)
    h = h1 @ w2 + b2
    h2 = jnp.where(h > 0, h, LEAKY_SLOPE * h)
    return h2 @ w3_row.T + b3


if __name__ == "__main__":
    key = jax.random.PRNGKey(0)
    k_x, k_p = jax.random.split(key)

    batch, input_dim = 8, 32
    x = jax.random.normal(k_x, (batch, input_dim), jnp.float32)

    params = init_params(k_p, input_dim)

    out = learner_forward(x, *params)
    out = jax.block_until_ready(out)

    ref = reference_forward(x, *params)
    assert out.shape == (batch, 1)
    assert jnp.allclose(out, ref, atol=1e-4, rtol=1e-4), "mismatch vs reference"

    print("KERNEL_OK")
</pallas_src>

<mosaic_0001>
module attributes {stable_mosaic.version = 11 : i64} {
  func.func @learner_fwd_kernel(%arg0: i32, %arg1: memref<128x32xf32, #tpu.memory_space<vmem>>, %arg2: memref<32x128xf32, #tpu.memory_space<vmem>>, %arg3: memref<1x128xf32, #tpu.memory_space<vmem>>, %arg4: memref<128x128xf32, #tpu.memory_space<vmem>>, %arg5: memref<1x128xf32, #tpu.memory_space<vmem>>, %arg6: memref<1x128xf32, #tpu.memory_space<vmem>>, %arg7: memref<1x1xf32, #tpu.memory_space<smem>>, %arg8: memref<1x128xf32, #tpu.memory_space<vmem>>) attributes {dimension_semantics = [#tpu.dimension_semantics<parallel>], iteration_bounds = array<i64: 1>, scalar_prefetch = 0 : i64, scratch_operands = 0 : i64, tpu.core_type = #tpu.core_type<tc>, window_params = [{transform_indices = @transform_0, window_bounds = array<i64: 128, 32>}, {pipeline_mode = #tpu.pipeline_mode<synchronous>, transform_indices = @transform_1, window_bounds = array<i64: 32, 128>}, {pipeline_mode = #tpu.pipeline_mode<synchronous>, transform_indices = @transform_2, window_bounds = array<i64: 1, 128>}, {pipeline_mode = #tpu.pipeline_mode<synchronous>, transform_indices = @transform_3, window_bounds = array<i64: 128, 128>}, {pipeline_mode = #tpu.pipeline_mode<synchronous>, transform_indices = @transform_4, window_bounds = array<i64: 1, 128>}, {pipeline_mode = #tpu.pipeline_mode<synchronous>, transform_indices = @transform_5, window_bounds = array<i64: 1, 128>}, {transform_indices = @transform_6, window_bounds = array<i64: 1, 1>}, {transform_indices = @transform_7, window_bounds = array<i64: 1, 128>}]} {
    %c0 = arith.constant 0 : index
    %c0_0 = arith.constant 0 : index
    %0 = vector.load %arg1[%c0, %c0_0] : memref<128x32xf32, #tpu.memory_space<vmem>>, vector<128x32xf32>
    %c0_1 = arith.constant 0 : index
    %c0_2 = arith.constant 0 : index
    %1 = vector.load %arg2[%c0_1, %c0_2] : memref<32x128xf32, #tpu.memory_space<vmem>>, vector<32x128xf32>
    %cst = arith.constant dense<0.000000e+00> : vector<128x128xf32>
    %2 = tpu.matmul %0, %1, %cst {dimension_numbers = #tpu.dot_dimension_numbers<[1], [0], [0], [1], [0, 0, 1, 1], [], []>} : vector<128x32xf32>, vector<32x128xf32>, vector<128x128xf32> -> vector<128x128xf32>
    %c0_3 = arith.constant 0 : index
    %c0_4 = arith.constant 0 : index
    %3 = vector.load %arg3[%c0_3, %c0_4] : memref<1x128xf32, #tpu.memory_space<vmem>>, vector<1x128xf32>
    %4 = vector.broadcast %3 : vector<1x128xf32> to vector<128x128xf32>
    %5 = arith.addf %2, %4 : vector<128x128xf32>
    %cst_5 = arith.constant 1.000000e-01 : f32
    %6 = vector.broadcast %cst_5 : f32 to vector<128x128xf32>
    %7 = arith.mulf %6, %5 : vector<128x128xf32>
    %8 = arith.maximumf %5, %7 : vector<128x128xf32>
    %c0_6 = arith.constant 0 : index
    %c0_7 = arith.constant 0 : index
    %9 = vector.load %arg4[%c0_6, %c0_7] : memref<128x128xf32, #tpu.memory_space<vmem>>, vector<128x128xf32>
    %cst_8 = arith.constant dense<0.000000e+00> : vector<128x128xf32>
    %10 = tpu.matmul %8, %9, %cst_8 {dimension_numbers = #tpu.dot_dimension_numbers<[1], [0], [0], [1], [0, 0, 1, 1], [], []>} : vector<128x128xf32>, vector<128x128xf32>, vector<128x128xf32> -> vector<128x128xf32>
    %c0_9 = arith.constant 0 : index
    %c0_10 = arith.constant 0 : index
    %11 = vector.load %arg5[%c0_9, %c0_10] : memref<1x128xf32, #tpu.memory_space<vmem>>, vector<1x128xf32>
    %12 = vector.broadcast %11 : vector<1x128xf32> to vector<128x128xf32>
    %13 = arith.addf %10, %12 : vector<128x128xf32>
    %cst_11 = arith.constant 1.000000e-01 : f32
    %14 = vector.broadcast %cst_11 : f32 to vector<128x128xf32>
    %15 = arith.mulf %14, %13 : vector<128x128xf32>
    %16 = arith.maximumf %13, %15 : vector<128x128xf32>
    %c0_12 = arith.constant 0 : index
    %c0_13 = arith.constant 0 : index
    %17 = vector.load %arg6[%c0_12, %c0_13] : memref<1x128xf32, #tpu.memory_space<vmem>>, vector<1x128xf32>
    %cst_14 = arith.constant dense<0.000000e+00> : vector<1x128xf32>
    %18 = tpu.matmul %17, %16, %cst_14 {dimension_numbers = #tpu.dot_dimension_numbers<[1], [1], [0], [0], [0, 0, 1, 0], [], []>} : vector<1x128xf32>, vector<128x128xf32>, vector<1x128xf32> -> vector<1x128xf32>
    %c0_15 = arith.constant 0 : index
    %c0_16 = arith.constant 0 : index
    %19 = memref.load %arg7[%c0_15, %c0_16] : memref<1x1xf32, #tpu.memory_space<smem>>
    %20 = vector.broadcast %19 : f32 to vector<1x128xf32>
    %21 = arith.addf %18, %20 : vector<1x128xf32>
    %c0_17 = arith.constant 0 : index
    %c0_18 = arith.constant 0 : index
    %22 = vector.load %arg8[%c0_17, %c0_18] : memref<1x128xf32, #tpu.memory_space<vmem>>, vector<1x128xf32>
    tpu.vector_store %arg8[%c0_17, %c0_18], %21 {strides = array<i32>} : memref<1x128xf32, #tpu.memory_space<vmem>>, vector<1x128xf32>,
    return
  }
  func.func @transform_0(%arg0: i32) -> (i32, i32) {
    %c0_i32 = arith.constant 0 : i32
    %c0_i32_0 = arith.constant 0 : i32
    return %arg0, %c0_i32 : i32, i32
  }
  func.func @transform_1(%arg0: i32) -> (i32, i32) {
    %c0_i32 = arith.constant 0 : i32
    %c0_i32_0 = arith.constant 0 : i32
    %c0_i32_1 = arith.constant 0 : i32
    return %c0_i32, %c0_i32_0 : i32, i32
  }
  func.func @transform_2(%arg0: i32) -> (i32, i32) {
    %c0_i32 = arith.constant 0 : i32
    %c0_i32_0 = arith.constant 0 : i32
    %c0_i32_1 = arith.constant 0 : i32
    return %c0_i32, %c0_i32_0 : i32, i32
  }
  func.func @transform_3(%arg0: i32) -> (i32, i32) {
    %c0_i32 = arith.constant 0 : i32
    %c0_i32_0 = arith.constant 0 : i32
    %c0_i32_1 = arith.constant 0 : i32
    return %c0_i32, %c0_i32_0 : i32, i32
  }
  func.func @transform_4(%arg0: i32) -> (i32, i32) {
    %c0_i32 = arith.constant 0 : i32
    %c0_i32_0 = arith.constant 0 : i32
    %c0_i32_1 = arith.constant 0 : i32
    return %c0_i32, %c0_i32_0 : i32, i32
  }
  func.func @transform_5(%arg0: i32) -> (i32, i32) {
    %c0_i32 = arith.constant 0 : i32
    %c0_i32_0 = arith.constant 0 : i32
    %c0_i32_1 = arith.constant 0 : i32
    return %c0_i32, %c0_i32_0 : i32, i32
  }
  func.func @transform_6(%arg0: i32) -> (i32, i32) {
    %c0_i32 = arith.constant 0 : i32
    %c0_i32_0 = arith.constant 0 : i32
    %c0_i32_1 = arith.constant 0 : i32
    return %c0_i32, %c0_i32_0 : i32, i32
  }
  func.func @transform_7(%arg0: i32) -> (i32, i32) {
    %c0_i32 = arith.constant 0 : i32
    %c0_i32_0 = arith.constant 0 : i32
    return %c0_i32, %arg0 : i32, i32
  }
}

</mosaic_0001>

<llo_original>
// kernel: learner_forward.1
$region0: #{learner_forward.1}
  #allocation0 [shape = 'u32[]', space=smem, size = 0x4, offset = 0x4, fixed_abs, tag = 'smem constant byte address 0x4 - core index']
  #allocation1 [shape = 'u32[144,128]{1,0:T(1,128)}', space=vmem, size = 0x12000, scoped, tag = 'internal scratch']
  #allocation2 [shape = 'f32[1,1]{1,0:T(1,128)S(6)}', space=smem, size = 0x200, scoped, tag = 'scoped memory for learner_forward.1']
  %s0 = inlined_call_operand.vmem [shape: f32[128,32], index: 0, kind: input, shape index: {}]
  %s1 = inlined_call_operand.hbm [shape: f32[32,128], index: 1, kind: input, shape index: {}]
  %s2 = inlined_call_operand.vmem [shape: f32[1,128], index: 2, kind: input, shape index: {}]
  %s3 = inlined_call_operand.vmem [shape: f32[128,128], index: 3, kind: input, shape index: {}]
  %s4 = inlined_call_operand.vmem [shape: f32[1,128], index: 4, kind: input, shape index: {}]
  %s5 = inlined_call_operand.vmem [shape: f32[1,128], index: 5, kind: input, shape index: {}]
  %s6 = inlined_call_operand.<no memory space> [shape: f32[1,1], index: 6, kind: input, shape index: {}]
  %s7 = inlined_call_operand.vmem [shape: f32[1,128], index: 7, kind: output, shape index: {}]
  %s8 = sld [smem:[#allocation0]]
  $region42: #{learner_forward.1} parent=0
    _
  %s10 = ssub.s32 1, %s8
  %s11 = scalar_select 0, %s10, %s8
  %12 = sst [smem:[#allocation2]] %s6
  $region1: #{learner_forward.1} parent=0
    #allocation3 [shape = 'u8[16384]{0}', space=vmem, size = 0x4000, scoped, tag = 'input window, operand 1, single buffered']
    #allocation4 [shape = 's32[1]{0}', space=sflag, size = 0x4, scoped, tag = 'scoped memory for learner_forward.1']
    %13 = vsyncpa [#allocation4], 0
    // Predicated region
    $region2: #{learner_forward.1} parent=1 // pred_check
      _
    $region3: #{learner_forward.1} parent=1 // pred_check_branch
      %15 = sbr.rel (0) target = $region5
    $region4: #{learner_forward.1} parent=1 // pred_region
      _
    $region5: #{learner_forward.1} parent=1 // pred_fallthru
      _
    // Predicated region
    $region6: #{learner_forward.1} parent=1 // pred_check
      _
    $region7: #{learner_forward.1} parent=1 // pred_check_branch
      %17 = sbr.rel (0) target = $region9
    $region8: #{learner_forward.1} parent=1 // pred_region
      %s19 = ssub.s32 512, 512
      %20 = vsyncadd [#allocation4], %s19
      %s21 = sshll.u32 [#allocation3], 4
      %s22 = int_to_ptr.vmem [resolvable:$true] %s21
      %27 = dma.hbm_to_vmem [thread:$0]  %s1, 512, %s22, [#allocation4], 128, 128, 8
    $region9: #{learner_forward.1} parent=1 // pred_fallthru
      _
    // Predicated region
    $region10: #{learner_forward.1} parent=1 // pred_check
      _
    $region11: #{learner_forward.1} parent=1 // pred_check_branch
      %29 = sbr.rel (0) target = $region13
    $region12: #{learner_forward.1} parent=1 // pred_region
      _
    $region13: #{learner_forward.1} parent=1 // pred_fallthru
      _
    // Predicated region
    $region14: #{learner_forward.1} parent=1 // pred_check
      _
    $region15: #{learner_forward.1} parent=1 // pred_check_branch
      %31 = sbr.rel (0) target = $region17
    $region16: #{learner_forward.1} parent=1 // pred_region
      _
    $region17: #{learner_forward.1} parent=1 // pred_fallthru
      _
    // Predicated region
    $region18: #{learner_forward.1} parent=1 // pred_check
      _
    $region19: #{learner_forward.1} parent=1 // pred_check_branch
      %33 = sbr.rel (0) target = $region21
    $region20: #{learner_forward.1} parent=1 // pred_region
      _
    $region21: #{learner_forward.1} parent=1 // pred_fallthru
      _
    // Predicated region
    $region22: #{learner_forward.1} parent=1 // pred_check
      _
    $region23: #{learner_forward.1} parent=1 // pred_check_branch
      %35 = sbr.rel (0) target = $region25
    $region24: #{learner_forward.1} parent=1 // pred_region
      _
    $region25: #{learner_forward.1} parent=1 // pred_fallthru
      _
    // Predicated region
    $region26: #{learner_forward.1} parent=1 // pred_check
      _
    $region27: #{learner_forward.1} parent=1 // pred_check_branch
      %37 = sbr.rel (0) target = $region29
    $region28: #{learner_forward.1} parent=1 // pred_region
      _
    $region29: #{learner_forward.1} parent=1 // pred_fallthru
      _
    // Predicated region
    $region30: #{learner_forward.1} parent=1 // pred_check
      _
    $region31: #{learner_forward.1} parent=1 // pred_check_branch
      %39 = sbr.rel (0) target = $region33
    $region32: #{learner_forward.1} parent=1 // pred_region
      %40 = dma.done [#allocation4], 512
    $region33: #{learner_forward.1} parent=1 // pred_fallthru
      _
    %v41 = vld [vmem:[%s0] sm:$0xff]
    %v42 = vld [vmem:[%s0 + $0x8] sm:$0xff]
    %v43 = vld [vmem:[%s0 + $0x10] sm:$0xff]
    %v44 = vld [vmem:[%s0 + $0x18] sm:$0xff]
    %v45 = vld [vmem:[%s0 + $0x20] sm:$0xff]
    %v46 = vld [vmem:[%s0 + $0x28] sm:$0xff]
    %v47 = vld [vmem:[%s0 + $0x30] sm:$0xff]
    %v48 = vld [vmem:[%s0 + $0x38] sm:$0xff]
    %v49 = vld [vmem:[%s0 + $0x40] sm:$0xff]
    %v50 = vld [vmem:[%s0 + $0x48] sm:$0xff]
    %v51 = vld [vmem:[%s0 + $0x50] sm:$0xff]
    %v52 = vld [vmem:[%s0 + $0x58] sm:$0xff]
    %v53 = vld [vmem:[%s0 + $0x60] sm:$0xff]
    %v54 = vld [vmem:[%s0 + $0x68] sm:$0xff]
    %v55 = vld [vmem:[%s0 + $0x70] sm:$0xff]
    %v56 = vld [vmem:[%s0 + $0x78] sm:$0xff]
    %v57 = vld [vmem:[#allocation3] sm:$0xff]
    %v58 = vld [vmem:[#allocation3 + $0x8] sm:$0xff]
    %v59 = vld [vmem:[#allocation3 + $0x10] sm:$0xff]
    %v60 = vld [vmem:[#allocation3 + $0x18] sm:$0xff]
    %v61 = vld [vmem:[%s2] sm:$0x1]
    %v63 = vlaneseq
    %v64 = vshrl.u32 %v63, 7
    %v65 = vsub.s32 0, %v64
    %v66 = vrot.slane %v61, %v65
    %vm68 = vcmask 261120
    %v70 = vsel %vm68, %v41, 0
    %v73 = vsel %vm68, %v42, 0
    %v76 = vsel %vm68, %v43, 0
    %v79 = vsel %vm68, %v44, 0
    %v82 = vsel %vm68, %v45, 0
    %v85 = vsel %vm68, %v46, 0
    %v88 = vsel %vm68, %v47, 0
    %v91 = vsel %vm68, %v48, 0
    %v94 = vsel %vm68, %v49, 0
    %v97 = vsel %vm68, %v50, 0
    %v100 = vsel %vm68, %v51, 0
    %v103 = vsel %vm68, %v52, 0
    %v106 = vsel %vm68, %v53, 0
    %v109 = vsel %vm68, %v54, 0
    %v112 = vsel %vm68, %v55, 0
    %v115 = vsel %vm68, %v56, 0
    %117 = vmatprep.subr.mxu0 0.0
    %118 = vmatpush1.msra.mxu0 %v57
    %119 = vmatprep.subr.mxu0 0.0
    %120 = vmatpush1.msra.mxu0 %v58
    %121 = vmatprep.subr.mxu0 0.0
    %122 = vmatpush1.msra.mxu0 %v59
    %123 = vmatprep.subr.mxu0 0.0
    %124 = vmatpush1.msra.mxu0 %v60
    %125 = vmatprep.subr.mxu0 0.0
    %126 = vmatpush1.msra.mxu0 0.0
    %127 = vmatprep.subr.mxu0 0.0
    %128 = vmatpush1.msra.mxu0 0.0
    %129 = vmatprep.subr.mxu0 0.0
    %130 = vmatpush1.msra.mxu0 0.0
    %131 = vmatprep.subr.mxu0 0.0
    %132 = vmatpush1.msra.mxu0 0.0
    %133 = vmatprep.subr.mxu0 0.0
    %134 = vmatpush1.msra.mxu0 0.0
    %135 = vmatprep.subr.mxu0 0.0
    %136 = vmatpush1.msra.mxu0 0.0
    %137 = vmatprep.subr.mxu0 0.0
    %138 = vmatpush1.msra.mxu0 0.0
    %139 = vmatprep.subr.mxu0 0.0
    %140 = vmatpush1.msra.mxu0 0.0
    %141 = vmatprep.subr.mxu0 0.0
    %142 = vmatpush1.msra.mxu0 0.0
    %143 = vmatprep.subr.mxu0 0.0
    %144 = vmatpush1.msra.mxu0 0.0
    %145 = vmatprep.subr.mxu0 0.0
    %146 = vmatpush1.msra.mxu0 0.0
    %147 = vmatprep.subr.mxu0 0.0
    %148 = vmatpush1.msra.mxu0 0.0
    %149 = vmatprep.subr.mxu0 0.0
    %150 = vmatpush1.msra.mxu0 0.0
    %151 = vmatprep.subr.mxu0 0.0
    %152 = vmatpush1.msra.mxu0 0.0
    %153 = vmatprep.subr.mxu0 0.0
    %154 = vmatpush1.msra.mxu0 0.0
    %155 = vmatprep.subr.mxu0 0.0
    %156 = vmatpush1.msra.mxu0 0.0
    %157 = vmatprep.subr.mxu0 0.0
    %158 = vmatpush1.msra.mxu0 0.0
    %159 = vmatprep.subr.mxu0 0.0
    %160 = vmatpush1.msra.mxu0 0.0
    %161 = vmatprep.subr.mxu0 0.0
    %162 = vmatpush1.msra.mxu0 0.0
    %163 = vmatprep.subr.mxu0 0.0
    %164 = vmatpush1.msra.mxu0 0.0
    %165 = vmatprep.subr.mxu0 0.0
    %166 = vmatpush1.msra.mxu0 0.0
    %167 = vmatprep.subr.mxu0 0.0
    %168 = vmatpush1.msra.mxu0 0.0
    %169 = vmatprep.subr.mxu0 0.0
    %170 = vmatpush1.msra.mxu0 0.0
    %171 = vmatprep.subr.mxu0 0.0
    %172 = vmatpush1.msra.mxu0 0.0
    %173 = vmatprep.subr.mxu0 0.0
    %174 = vmatpush1.msra.mxu0 0.0
    %175 = vmatprep.subr.mxu0 0.0
    %176 = vmatpush1.msra.mxu0 0.0
    %177 = vmatprep.subr.mxu0 0.0
    %178 = vmatpush1.msra.mxu0 0.0
    %179 = vmatprep.subr.mxu0 0.0
    %180 = vmatpush1.msra.mxu0 0.0
    %181 = vmatprep.mubr.f32.mxu0 0.0
    %182 = vmatmul.mubr.f32.gmra.mrb[0].mxu0 %v70
    %v183 = vpop.f32.mrb[0].mxu0
    %v184 = vadd.f32 %v66, %v183
    %v185 = vpop.f32.mrb[0].mxu0
    %186 = vmatprep.mubr.f32.mxu0 0.0
    %187 = vmatmul.mubr.f32.gmra.mrb[0].mxu0 %v73
    %v188 = vpop.f32.mrb[0].mxu0
    %v189 = vadd.f32 %v66, %v188
    %v190 = vpop.f32.mrb[0].mxu0
    %191 = vmatprep.mubr.f32.mxu0 0.0
    %192 = vmatmul.mubr.f32.gmra.mrb[0].mxu0 %v76
    %v193 = vpop.f32.mrb[0].mxu0
    %v194 = vadd.f32 %v66, %v193
    %v195 = vpop.f32.mrb[0].mxu0
    %196 = vmatprep.mubr.f32.mxu0 0.0
    %197 = vmatmul.mubr.f32.gmra.mrb[0].mxu0 %v79
    %v198 = vpop.f32.mrb[0].mxu0
    %v199 = vadd.f32 %v66, %v198
    %v200 = vpop.f32.mrb[0].mxu0
    %201 = vmatprep.mubr.f32.mxu0 0.0
    %202 = vmatmul.mubr.f32.gmra.mrb[0].mxu0 %v82
    %v203 = vpop.f32.mrb[0].mxu0
    %v204 = vadd.f32 %v66, %v203
    %v205 = vpop.f32.mrb[0].mxu0
    %206 = vmatprep.mubr.f32.mxu0 0.0
    %207 = vmatmul.mubr.f32.gmra.mrb[0].mxu0 %v85
    %v208 = vpop.f32.mrb[0].mxu0
    %v209 = vadd.f32 %v66, %v208
    %v210 = vpop.f32.mrb[0].mxu0
    %211 = vmatprep.mubr.f32.mxu0 0.0
    %212 = vmatmul.mubr.f32.gmra.mrb[0].mxu0 %v88
    %v213 = vpop.f32.mrb[0].mxu0
    %v214 = vadd.f32 %v66, %v213
    %v215 = vpop.f32.mrb[0].mxu0
    %216 = vmatprep.mubr.f32.mxu0 0.0
    %217 = vmatmul.mubr.f32.gmra.mrb[0].mxu0 %v91
    %v218 = vpop.f32.mrb[0].mxu0
    %v219 = vadd.f32 %v66, %v218
    %v220 = vpop.f32.mrb[0].mxu0
    %221 = vmatprep.mubr.f32.mxu0 0.0
    %222 = vmatmul.mubr.f32.gmra.mrb[0].mxu0 %v94
    %v223 = vpop.f32.mrb[0].mxu0
    %v224 = vadd.f32 %v66, %v223
    %v225 = vpop.f32.mrb[0].mxu0
    %226 = vmatprep.mubr.f32.mxu0 0.0
    %227 = vmatmul.mubr.f32.gmra.mrb[0].mxu0 %v97
    %v228 = vpop.f32.mrb[0].mxu0
    %v229 = vadd.f32 %v66, %v228
    %v230 = vpop.f32.mrb[0].mxu0
    %231 = vmatprep.mubr.f32.mxu0 0.0
    %232 = vmatmul.mubr.f32.gmra.mrb[0].mxu0 %v100
    %v233 = vpop.f32.mrb[0].mxu0
    %v234 = vadd.f32 %v66, %v233
    %v235 = vpop.f32.mrb[0].mxu0
    %236 = vmatprep.mubr.f32.mxu0 0.0
    %237 = vmatmul.mubr.f32.gmra.mrb[0].mxu0 %v103
    %v238 = vpop.f32.mrb[0].mxu0
    %v239 = vadd.f32 %v66, %v238
    %v240 = vpop.f32.mrb[0].mxu0
    %241 = vmatprep.mubr.f32.mxu0 0.0
    %242 = vmatmul.mubr.f32.gmra.mrb[0].mxu0 %v106
    %v243 = vpop.f32.mrb[0].mxu0
    %v244 = vadd.f32 %v66, %v243
    %v245 = vpop.f32.mrb[0].mxu0
    %246 = vmatprep.mubr.f32.mxu0 0.0
    %247 = vmatmul.mubr.f32.gmra.mrb[0].mxu0 %v109
    %v248 = vpop.f32.mrb[0].mxu0
    %v249 = vadd.f32 %v66, %v248
    %v250 = vpop.f32.mrb[0].mxu0
    %251 = vmatprep.mubr.f32.mxu0 0.0
    %252 = vmatmul.mubr.f32.gmra.mrb[0].mxu0 %v112
    %v253 = vpop.f32.mrb[0].mxu0
    %v254 = vadd.f32 %v66, %v253
    %v255 = vpop.f32.mrb[0].mxu0
    %256 = vmatprep.mubr.f32.mxu0 0.0
    %257 = vmatmul.mubr.f32.gmra.mrb[0].mxu0 %v115
    %v258 = vpop.f32.mrb[0].mxu0
    %v259 = vadd.f32 %v66, %v258
    %v260 = vpop.f32.mrb[0].mxu0
    %261 = vdwg.mxu0
    %v262 = vmul.f32 %v184, 0.1
    %v263 = vmul.f32 %v189, 0.1
    %v264 = vmul.f32 %v194, 0.1
    %v265 = vmul.f32 %v199, 0.1
    %v266 = vmul.f32 %v204, 0.1
    %v267 = vmul.f32 %v209, 0.1
    %v268 = vmul.f32 %v214, 0.1
    %v269 = vmul.f32 %v219, 0.1
    %v270 = vmul.f32 %v224, 0.1
    %v271 = vmul.f32 %v229, 0.1
    %v272 = vmul.f32 %v234, 0.1
    %v273 = vmul.f32 %v239, 0.1
    %v274 = vmul.f32 %v244, 0.1
    %v275 = vmul.f32 %v249, 0.1
    %v276 = vmul.f32 %v254, 0.1
    %v277 = vmul.f32 %v259, 0.1
    %v278 = vmax.f32 %v184, %v262
    %v279 = vmax.f32 %v189, %v263
    %v280 = vmax.f32 %v194, %v264
    %v281 = vmax.f32 %v199, %v265
    %v282 = vmax.f32 %v204, %v266
    %v283 = vmax.f32 %v209, %v267
    %v284 = vmax.f32 %v214, %v268
    %v285 = vmax.f32 %v219, %v269
    %v286 = vmax.f32 %v224, %v270
    %v287 = vmax.f32 %v229, %v271
    %v288 = vmax.f32 %v234, %v272
    %v289 = vmax.f32 %v239, %v273
    %v290 = vmax.f32 %v244, %v274
    %v291 = vmax.f32 %v249, %v275
    %v292 = vmax.f32 %v254, %v276
    %v293 = vmax.f32 %v259, %v277
    %v294 = vld [vmem:[%s3] sm:$0xff]
    %v295 = vld [vmem:[%s3 + $0x8] sm:$0xff]
    %v296 = vld [vmem:[%s3 + $0x10] sm:$0xff]
    %v297 = vld [vmem:[%s3 + $0x18] sm:$0xff]
    %v298 = vld [vmem:[%s3 + $0x20] sm:$0xff]
    %v299 = vld [vmem:[%s3 + $0x28] sm:$0xff]
    %v300 = vld [vmem:[%s3 + $0x30] sm:$0xff]
    %v301 = vld [vmem:[%s3 + $0x38] sm:$0xff]
    %v302 = vld [vmem:[%s3 + $0x40] sm:$0xff]
    %v303 = vld [vmem:[%s3 + $0x48] sm:$0xff]
    %v304 = vld [vmem:[%s3 + $0x50] sm:$0xff]
    %v305 = vld [vmem:[%s3 + $0x58] sm:$0xff]
    %v306 = vld [vmem:[%s3 + $0x60] sm:$0xff]
    %v307 = vld [vmem:[%s3 + $0x68] sm:$0xff]
    %v308 = vld [vmem:[%s3 + $0x70] sm:$0xff]
    %v309 = vld [vmem:[%s3 + $0x78] sm:$0xff]
    %v310 = vld [vmem:[%s4] sm:$0x1]
    %v312 = vlaneseq
    %v313 = vshrl.u32 %v312, 7
    %v314 = vsub.s32 0, %v313
    %v315 = vrot.slane %v310, %v314
    %317 = vmatprep.subr.mxu0 0.0
    %318 = vmatpush1.msra.mxu0 %v294
    %319 = vmatprep.subr.mxu0 0.0
    %320 = vmatpush1.msra.mxu0 %v295
    %321 = vmatprep.subr.mxu0 0.0
    %322 = vmatpush1.msra.mxu0 %v296
    %323 = vmatprep.subr.mxu0 0.0
    %324 = vmatpush1.msra.mxu0 %v297
    %325 = vmatprep.subr.mxu0 0.0
    %326 = vmatpush1.msra.mxu0 %v298
    %327 = vmatprep.subr.mxu0 0.0
    %328 = vmatpush1.msra.mxu0 %v299
    %329 = vmatprep.subr.mxu0 0.0
    %330 = vmatpush1.msra.mxu0 %v300
    %331 = vmatprep.subr.mxu0 0.0
    %332 = vmatpush1.msra.mxu0 %v301
    %333 = vmatprep.subr.mxu0 0.0
    %334 = vmatpush1.msra.mxu0 %v302
    %335 = vmatprep.subr.mxu0 0.0
    %336 = vmatpush1.msra.mxu0 %v303
    %337 = vmatprep.subr.mxu0 0.0
    %338 = vmatpush1.msra.mxu0 %v304
    %339 = vmatprep.subr.mxu0 0.0
    %340 = vmatpush1.msra.mxu0 %v305
    %341 = vmatprep.subr.mxu0 0.0
    %342 = vmatpush1.msra.mxu0 %v306
    %343 = vmatprep.subr.mxu0 0.0
    %344 = vmatpush1.msra.mxu0 %v307
    %345 = vmatprep.subr.mxu0 0.0
    %346 = vmatpush1.msra.mxu0 %v308
    %347 = vmatprep.subr.mxu0 0.0
    %348 = vmatpush1.msra.mxu0 %v309
    %349 = vmatprep.subr.mxu0 0.0
    %350 = vmatpush1.msra.mxu0 0.0
    %351 = vmatprep.subr.mxu0 0.0
    %352 = vmatpush1.msra.mxu0 0.0
    %353 = vmatprep.subr.mxu0 0.0
    %354 = vmatpush1.msra.mxu0 0.0
    %355 = vmatprep.subr.mxu0 0.0
    %356 = vmatpush1.msra.mxu0 0.0
    %357 = vmatprep.subr.mxu0 0.0
    %358 = vmatpush1.msra.mxu0 0.0
    %359 = vmatprep.subr.mxu0 0.0
    %360 = vmatpush1.msra.mxu0 0.0
    %361 = vmatprep.subr.mxu0 0.0
    %362 = vmatpush1.msra.mxu0 0.0
    %363 = vmatprep.subr.mxu0 0.0
    %364 = vmatpush1.msra.mxu0 0.0
    %365 = vmatprep.subr.mxu0 0.0
    %366 = vmatpush1.msra.mxu0 0.0
    %367 = vmatprep.subr.mxu0 0.0
    %368 = vmatpush1.msra.mxu0 0.0
    %369 = vmatprep.subr.mxu0 0.0
    %370 = vmatpush1.msra.mxu0 0.0
    %371 = vmatprep.subr.mxu0 0.0
    %372 = vmatpush1.msra.mxu0 0.0
    %373 = vmatprep.subr.mxu0 0.0
    %374 = vmatpush1.msra.mxu0 0.0
    %375 = vmatprep.subr.mxu0 0.0
    %376 = vmatpush1.msra.mxu0 0.0
    %377 = vmatprep.subr.mxu0 0.0
    %378 = vmatpush1.msra.mxu0 0.0
    %379 = vmatprep.subr.mxu0 0.0
    %380 = vmatpush1.msra.mxu0 0.0
    %381 = vmatprep.mubr.f32.mxu0 0.0
    %382 = vmatmul.mubr.f32.gmra.mrb[0].mxu0 %v278
    %v383 = vpop.f32.mrb[0].mxu0
    %v384 = vadd.f32 %v315, %v383
    %v385 = vpop.f32.mrb[0].mxu0
    %386 = vmatprep.mubr.f32.mxu0 0.0
    %387 = vmatmul.mubr.f32.gmra.mrb[0].mxu0 %v279
    %v388 = vpop.f32.mrb[0].mxu0
    %v389 = vadd.f32 %v315, %v388
    %v390 = vpop.f32.mrb[0].mxu0
    %391 = vmatprep.mubr.f32.mxu0 0.0
    %392 = vmatmul.mubr.f32.gmra.mrb[0].mxu0 %v280
    %v393 = vpop.f32.mrb[0].mxu0
    %v394 = vadd.f32 %v315, %v393
    %v395 = vpop.f32.mrb[0].mxu0
    %396 = vmatprep.mubr.f32.mxu0 0.0
    %397 = vmatmul.mubr.f32.gmra.mrb[0].mxu0 %v281
    %v398 = vpop.f32.mrb[0].mxu0
    %v399 = vadd.f32 %v315, %v398
    %v400 = vpop.f32.mrb[0].mxu0
    %401 = vmatprep.mubr.f32.mxu0 0.0
    %402 = vmatmul.mubr.f32.gmra.mrb[0].mxu0 %v282
    %v403 = vpop.f32.mrb[0].mxu0
    %v404 = vadd.f32 %v315, %v403
    %v405 = vpop.f32.mrb[0].mxu0
    %406 = vmatprep.mubr.f32.mxu0 0.0
    %407 = vmatmul.mubr.f32.gmra.mrb[0].mxu0 %v283
    %v408 = vpop.f32.mrb[0].mxu0
    %v409 = vadd.f32 %v315, %v408
    %v410 = vpop.f32.mrb[0].mxu0
    %411 = vmatprep.mubr.f32.mxu0 0.0
    %412 = vmatmul.mubr.f32.gmra.mrb[0].mxu0 %v284
    %v413 = vpop.f32.mrb[0].mxu0
    %v414 = vadd.f32 %v315, %v413
    %v415 = vpop.f32.mrb[0].mxu0
    %416 = vmatprep.mubr.f32.mxu0 0.0
    %417 = vmatmul.mubr.f32.gmra.mrb[0].mxu0 %v285
    %v418 = vpop.f32.mrb[0].mxu0
    %v419 = vadd.f32 %v315, %v418
    %v420 = vpop.f32.mrb[0].mxu0
    %421 = vmatprep.mubr.f32.mxu0 0.0
    %422 = vmatmul.mubr.f32.gmra.mrb[0].mxu0 %v286
    %v423 = vpop.f32.mrb[0].mxu0
    %v424 = vadd.f32 %v315, %v423
    %v425 = vpop.f32.mrb[0].mxu0
    %426 = vmatprep.mubr.f32.mxu0 0.0
    %427 = vmatmul.mubr.f32.gmra.mrb[0].mxu0 %v287
    %v428 = vpop.f32.mrb[0].mxu0
    %v429 = vadd.f32 %v315, %v428
    %v430 = vpop.f32.mrb[0].mxu0
    %431 = vmatprep.mubr.f32.mxu0 0.0
    %432 = vmatmul.mubr.f32.gmra.mrb[0].mxu0 %v288
    %v433 = vpop.f32.mrb[0].mxu0
    %v434 = vadd.f32 %v315, %v433
    %v435 = vpop.f32.mrb[0].mxu0
    %436 = vmatprep.mubr.f32.mxu0 0.0
    %437 = vmatmul.mubr.f32.gmra.mrb[0].mxu0 %v289
    %v438 = vpop.f32.mrb[0].mxu0
    %v439 = vadd.f32 %v315, %v438
    %v440 = vpop.f32.mrb[0].mxu0
    %441 = vmatprep.mubr.f32.mxu0 0.0
    %442 = vmatmul.mubr.f32.gmra.mrb[0].mxu0 %v290
    %v443 = vpop.f32.mrb[0].mxu0
    %v444 = vadd.f32 %v315, %v443
    %v445 = vpop.f32.mrb[0].mxu0
    %446 = vmatprep.mubr.f32.mxu0 0.0
    %447 = vmatmul.mubr.f32.gmra.mrb[0].mxu0 %v291
    %v448 = vpop.f32.mrb[0].mxu0
    %v449 = vadd.f32 %v315, %v448
    %v450 = vpop.f32.mrb[0].mxu0
    %451 = vmatprep.mubr.f32.mxu0 0.0
    %452 = vmatmul.mubr.f32.gmra.mrb[0].mxu0 %v292
    %v453 = vpop.f32.mrb[0].mxu0
    %v454 = vadd.f32 %v315, %v453
    %v455 = vpop.f32.mrb[0].mxu0
    %456 = vmatprep.mubr.f32.mxu0 0.0
    %457 = vmatmul.mubr.f32.gmra.mrb[0].mxu0 %v293
    %v458 = vpop.f32.mrb[0].mxu0
    %v459 = vadd.f32 %v315, %v458
    %v460 = vpop.f32.mrb[0].mxu0
    %461 = vdwg.mxu0
    %v462 = vmul.f32 %v384, 0.1
    %v463 = vmul.f32 %v389, 0.1
    %v464 = vmul.f32 %v394, 0.1
    %v465 = vmul.f32 %v399, 0.1
    %v466 = vmul.f32 %v404, 0.1
    %v467 = vmul.f32 %v409, 0.1
    %v468 = vmul.f32 %v414, 0.1
    %v469 = vmul.f32 %v419, 0.1
    %v470 = vmul.f32 %v424, 0.1
    %v471 = vmul.f32 %v429, 0.1
    %v472 = vmul.f32 %v434, 0.1
    %v473 = vmul.f32 %v439, 0.1
    %v474 = vmul.f32 %v444, 0.1
    %v475 = vmul.f32 %v449, 0.1
    %v476 = vmul.f32 %v454, 0.1
    %v477 = vmul.f32 %v459, 0.1
    %v478 = vmax.f32 %v384, %v462
    %v479 = vmax.f32 %v389, %v463
    %v480 = vmax.f32 %v394, %v464
    %v481 = vmax.f32 %v399, %v465
    %v482 = vmax.f32 %v404, %v466
    %v483 = vmax.f32 %v409, %v467
    %v484 = vmax.f32 %v414, %v468
    %v485 = vmax.f32 %v419, %v469
    %v486 = vmax.f32 %v424, %v470
    %v487 = vmax.f32 %v429, %v471
    %v488 = vmax.f32 %v434, %v472
    %v489 = vmax.f32 %v439, %v473
    %v490 = vmax.f32 %v444, %v474
    %v491 = vmax.f32 %v449, %v475
    %v492 = vmax.f32 %v454, %v476
    %v493 = vmax.f32 %v459, %v477
    %v494 = vld [vmem:[%s5] sm:$0x1]
    %s495 = sld [smem:[#allocation2]]
    %v496 = vstv %s495
    %497 = vmatprep.subr.mxu0 0.0
    %498 = vmatpush1.xpose.msra.mxu0 %v478
    %499 = vmatprep.subr.mxu0 0.0
    %500 = vmatpush1.xpose.msra.mxu0 %v479
    %501 = vmatprep.subr.mxu0 0.0
    %502 = vmatpush1.xpose.msra.mxu0 %v480
    %503 = vmatprep.subr.mxu0 0.0
    %504 = vmatpush1.xpose.msra.mxu0 %v481
    %505 = vmatprep.subr.mxu0 0.0
    %506 = vmatpush1.xpose.msra.mxu0 %v482
    %507 = vmatprep.subr.mxu0 0.0
    %508 = vmatpush1.xpose.msra.mxu0 %v483
    %509 = vmatprep.subr.mxu0 0.0
    %510 = vmatpush1.xpose.msra.mxu0 %v484
    %511 = vmatprep.subr.mxu0 0.0
    %512 = vmatpush1.xpose.msra.mxu0 %v485
    %513 = vmatprep.subr.mxu0 0.0
    %514 = vmatpush1.xpose.msra.mxu0 %v486
    %515 = vmatprep.subr.mxu0 0.0
    %516 = vmatpush1.xpose.msra.mxu0 %v487
    %517 = vmatprep.subr.mxu0 0.0
    %518 = vmatpush1.xpose.msra.mxu0 %v488
    %519 = vmatprep.subr.mxu0 0.0
    %520 = vmatpush1.xpose.msra.mxu0 %v489
    %521 = vmatprep.subr.mxu0 0.0
    %522 = vmatpush1.xpose.msra.mxu0 %v490
    %523 = vmatprep.subr.mxu0 0.0
    %524 = vmatpush1.xpose.msra.mxu0 %v491
    %525 = vmatprep.subr.mxu0 0.0
    %526 = vmatpush1.xpose.msra.mxu0 %v492
    %527 = vmatprep.subr.mxu0 0.0
    %528 = vmatpush1.xpose.msra.mxu0 %v493
    %529 = vmatprep.subr.mxu0 0.0
    %530 = vmatpush1.xpose.msra.mxu0 0.0
    %531 = vmatprep.subr.mxu0 0.0
    %532 = vmatpush1.xpose.msra.mxu0 0.0
    %533 = vmatprep.subr.mxu0 0.0
    %534 = vmatpush1.xpose.msra.mxu0 0.0
    %535 = vmatprep.subr.mxu0 0.0
    %536 = vmatpush1.xpose.msra.mxu0 0.0
    %537 = vmatprep.subr.mxu0 0.0
    %538 = vmatpush1.xpose.msra.mxu0 0.0
    %539 = vmatprep.subr.mxu0 0.0
    %540 = vmatpush1.xpose.msra.mxu0 0.0
    %541 = vmatprep.subr.mxu0 0.0
    %542 = vmatpush1.xpose.msra.mxu0 0.0
    %543 = vmatprep.subr.mxu0 0.0
    %544 = vmatpush1.xpose.msra.mxu0 0.0
    %545 = vmatprep.subr.mxu0 0.0
    %546 = vmatpush1.xpose.msra.mxu0 0.0
    %547 = vmatprep.subr.mxu0 0.0
    %548 = vmatpush1.xpose.msra.mxu0 0.0
    %549 = vmatprep.subr.mxu0 0.0
    %550 = vmatpush1.xpose.msra.mxu0 0.0
    %551 = vmatprep.subr.mxu0 0.0
    %552 = vmatpush1.xpose.msra.mxu0 0.0
    %553 = vmatprep.subr.mxu0 0.0
    %554 = vmatpush1.xpose.msra.mxu0 0.0
    %555 = vmatprep.subr.mxu0 0.0
    %556 = vmatpush1.xpose.msra.mxu0 0.0
    %557 = vmatprep.subr.mxu0 0.0
    %558 = vmatpush1.xpose.msra.mxu0 0.0
    %559 = vmatprep.subr.mxu0 0.0
    %560 = vmatpush1.xpose.msra.mxu0 0.0
    %561 = vmatprep.mubr.f32.mxu0 0.0
    %562 = vmatmul.mubr.f32.gmra.mrb[0].mxu0 %v494
    %v563 = vpop.f32.mrb[0].mxu0
    %v564 = vadd.f32 %v496, %v563
    %v565 = vpop.f32.mrb[0].mxu0
    %566 = vdwg.mxu0
    %567 = vst [vmem:[%s7] sm:$0x1] %v564
    // Predicated region
    $region34: #{learner_forward.1} parent=1 // pred_check
      _
    $region35: #{learner_forward.1} parent=1 // pred_check_branch
      %569 = sbr.rel (0) target = $region37
    $region36: #{learner_forward.1} parent=1 // pred_region
      _
    $region37: #{learner_forward.1} parent=1 // pred_fallthru
      _
    // Predicated region
    $region38: #{learner_forward.1} parent=1 // pred_check
      _
    $region39: #{learner_forward.1} parent=1 // pred_check_branch
      %571 = sbr.rel (0) target = $region41
    $region40: #{learner_forward.1} parent=1 // pred_region
      _
    $region41: #{learner_forward.1} parent=1 // pred_fallthru
      _
    %572 = vsyncpa [#allocation4], 1

</llo_original>
